<compile_context>
chip_gen: v5e
topology: v5e:2x2
jax: 0.10.0
libtpu: 0.0.40
codegen_flags: <defaults>
</compile_context>

<pallas_src>
import functools

import jax
import jax.numpy as jnp
from jax import lax
from jax.experimental import pallas as pl
from jax.experimental.pallas import tpu as pltpu


def _round_up(x, m):
    return ((x + m - 1) // m) * m


# ---------------------------------------------------------------------------
# Kernel
# ---------------------------------------------------------------------------
def _entity_kernel(subj_ref, obj_ref, w_ref, b_ref, out_ref):
    # subj_ref / obj_ref: (TM, C, L) native input dtype
    # w_ref: (C, C) torch Linear weight (out, in), native dtype (resident across grid)
    # b_ref: (1, C) bias (resident across grid)
    # out_ref: (TM, 4*C) float32
    tm = out_ref.shape[0]
    C = w_ref.shape[0]
    L = subj_ref.shape[-1]

    s = subj_ref[...]
    o = obj_ref[...]

    inv_l = 1.0 / L
    # AdaptiveAvgPool1d(1) / AdaptiveMaxPool1d(1) == full reduction over L (lane axis).
    # Max in native dtype (exact); avg accumulated in f32 (no full-tile f32 temp).
    s_avg = jnp.sum(s, axis=-1, dtype=jnp.float32) * inv_l        # (TM, C)
    s_max = jnp.max(s, axis=-1).astype(jnp.float32)               # (TM, C)
    o_avg = jnp.sum(o, axis=-1, dtype=jnp.float32) * inv_l        # (TM, C)
    o_max = jnp.max(o, axis=-1).astype(jnp.float32)               # (TM, C)

    # Stack the four pooled matrices -> a single MXU weight push.
    pooled = jnp.concatenate([s_avg, s_max, o_avg, o_max], axis=0)  # (4*TM, C)

    w = w_ref[...]                       # native dtype, fed straight to the MXU
    b = b_ref[...].astype(jnp.float32)   # (1, C), broadcasts over rows

    # x @ W.T without transposing W: contract LHS dim 1 with W's dim 1 (the "in" axis).
    dn = (((1,), (1,)), ((), ()))
    y = lax.dot_general(pooled.astype(w.dtype), w, dn,
                        preferred_element_type=jnp.float32) + b     # (4*TM, C) f32

    # Direct slice stores (C static): no (TM, 4C) concat temp, one store per quadrant.
    out_ref[:, 0 * C:1 * C] = y[0 * tm:1 * tm].astype(out_ref.dtype)
    out_ref[:, 1 * C:2 * C] = y[1 * tm:2 * tm].astype(out_ref.dtype)
    out_ref[:, 2 * C:3 * C] = y[2 * tm:3 * tm].astype(out_ref.dtype)
    out_ref[:, 3 * C:4 * C] = y[3 * tm:4 * tm].astype(out_ref.dtype)


# ---------------------------------------------------------------------------
# VMEM-aware tile sizing
# ---------------------------------------------------------------------------
def _vmem_footprint_bytes(tm, C, L, in_itemsize, w_itemsize):
    """Full footprint for one pipelined step: streamed inputs (x2 buffers), output
    (x2 buffers), resident W/b (default x2 buffers), and in-kernel temporaries."""
    c8 = _round_up(C, 8)
    c128 = _round_up(C, 128)
    l128 = _round_up(L, 128)
    c4_128 = _round_up(4 * C, 128)
    tm8 = _round_up(tm, 8)

    inputs = 2 * 2 * tm8 * c8 * l128 * in_itemsize          # subj + obj, double-buffered
    outputs = 2 * tm8 * c4_128 * 4                          # f32 output, double-buffered
    params = 2 * (c8 * c128 + 8 * c128) * w_itemsize        # W + b (default double-buffered)
    temps = 3 * _round_up(4 * tm8, 8) * c128 * 4            # pooled stack, matmul result, slack
    return inputs + outputs + params + temps


def _vmem_budget_bytes():
    """~75% of per-core VMEM: ~96 MiB on v5e/v6e (128 MiB), ~48 MiB on v7x (64 MiB)."""
    cap = None
    try:
        info = pltpu.get_tpu_info()
        cap = getattr(info, "vmem_capacity_bytes", None)
    except Exception:
        cap = None
    if not cap:
        cap = 64 * 1024 * 1024          # conservative fallback: v7x per-core VMEM
    return int(min(3 * cap // 4, 100 * 1024 * 1024))


def _pick_block_n(N, C, L, in_itemsize, w_itemsize, budget):
    """Largest row tile (multiple of 8) whose full footprint fits the budget, capped so
    the grid keeps >= 2 steps (lets the parallel N axis shard across v7x's 2 TCs)."""
    if N <= 8:
        return max(N, 1)
    cap = min(1024, max(8, (N // 8) * 8))
    if N >= 16:
        cap = min(cap, _round_up(pl.cdiv(N, 2), 8))
    tm = 8
    cand = 8
    while cand <= cap:
        if _vmem_footprint_bytes(cand, C, L, in_itemsize, w_itemsize) <= budget:
            tm = cand
            cand += 8
        else:
            break
    return tm


# ---------------------------------------------------------------------------
# pallas_call wrapper
# ---------------------------------------------------------------------------
@functools.partial(jax.jit, static_argnames=("tm", "vmem_limit_bytes"))
def _entity_pallas_call(subject_feats_in, object_feats_in, W, b, *, tm, vmem_limit_bytes):
    N, C, L = subject_feats_in.shape
    in_itemsize = jnp.dtype(subject_feats_in.dtype).itemsize
    w_itemsize = jnp.dtype(W.dtype).itemsize
    b2 = b.reshape(1, C)

    cost = pl.CostEstimate(
        flops=2 * (4 * N) * C * C,
        transcendentals=0,
        bytes_accessed=(2 * N * C * L * in_itemsize
                        + (C * C + C) * w_itemsize
                        + N * 4 * C * 4),
    )

    return pl.pallas_call(
        _entity_kernel,
        out_shape=jax.ShapeDtypeStruct((N, 4 * C), jnp.float32),
        grid=(pl.cdiv(N, tm),),
        in_specs=[
            pl.BlockSpec((tm, C, L), lambda i: (i, 0, 0)),   # subject tile (streamed over N)
            pl.BlockSpec((tm, C, L), lambda i: (i, 0, 0)),   # object tile  (streamed over N)
            pl.BlockSpec((C, C), lambda i: (0, 0)),          # weight: resident across grid
            pl.BlockSpec((1, C), lambda i: (0, 0)),          # bias:   resident across grid
        ],
        out_specs=pl.BlockSpec((tm, 4 * C), lambda i: (i, 0)),
        compiler_params=pltpu.CompilerParams(
            dimension_semantics=("parallel",),
            vmem_limit_bytes=int(vmem_limit_bytes),
        ),
        cost_estimate=cost,
    )(subject_feats_in, object_feats_in, W, b2)


def entity_avg_max_fc_bn_feats(subject_feats_in, object_feats_in, bert_feat, W, b):
    """subject/object_feats_in: (N, C, L); W: (C, C) torch Linear weight (out, in); b: (C,).
    Returns (N, 4C) float32. bert_feat is accepted but unused (matches reference forward)."""
    del bert_feat
    N, C, L = subject_feats_in.shape
    assert object_feats_in.shape == (N, C, L)
    assert W.shape == (C, C) and b.shape == (C,)

    in_itemsize = jnp.dtype(subject_feats_in.dtype).itemsize
    w_itemsize = jnp.dtype(W.dtype).itemsize

    budget = _vmem_budget_bytes()
    tm = _pick_block_n(N, C, L, in_itemsize, w_itemsize, budget)
    footprint = _vmem_footprint_bytes(tm, C, L, in_itemsize, w_itemsize)
    vmem_limit = min(max(budget, footprint), 112 * 1024 * 1024)

    return _entity_pallas_call(subject_feats_in, object_feats_in, W, b,
                               tm=tm, vmem_limit_bytes=vmem_limit)


# ---------------------------------------------------------------------------
# Pure-JAX reference + self-test
# ---------------------------------------------------------------------------
def _reference_jax(subj, obj, W, b):
    fc = lambda x: x @ W.T + b
    s_avg = fc(jnp.mean(subj, axis=-1))
    s_max = fc(jnp.max(subj, axis=-1))
    o_avg = fc(jnp.mean(obj, axis=-1))
    o_max = fc(jnp.max(obj, axis=-1))
    return jnp.concatenate([s_avg, s_max, o_avg, o_max], axis=1)   # (N, 4C)


if __name__ == "__main__":
    key = jax.random.PRNGKey(0)
    k1, k2, k3, k4, k5, k6, k7 = jax.random.split(key, 7)

    # Small synthetic shapes: N entities = 2, feats_in_channel C = 8, seq length L = 16.
    N, C, L = 2, 8, 16
    subject_feats = jax.random.normal(k1, (N, C, L), dtype=jnp.float32)
    object_feats = jax.random.normal(k2, (N, C, L), dtype=jnp.float32)
    bert_feat = jax.random.normal(k3, (N, 32), dtype=jnp.float32)    # unused by forward

    # Deterministic Linear(C, C) parameters (synthetic init, no checkpoint load).
    bound = 1.0 / jnp.sqrt(C)
    W = jax.random.uniform(k4, (C, C), minval=-bound, maxval=bound, dtype=jnp.float32)
    b = jax.random.uniform(k5, (C,), minval=-bound, maxval=bound, dtype=jnp.float32)

    out = entity_avg_max_fc_bn_feats(subject_feats, object_feats, bert_feat, W, b)
    out = jax.block_until_ready(out)
    ref = _reference_jax(subject_feats, object_feats, W, b)
    assert out.shape == ref.shape, (out.shape, ref.shape)
    assert jnp.allclose(out, ref, atol=1e-4, rtol=1e-4), float(jnp.max(jnp.abs(out - ref)))

    # Second shape exercises the multi-step streaming grid + partial last row-block path.
    N2 = 20
    subject2 = jax.random.normal(k6, (N2, C, L), dtype=jnp.float32)
    object2 = jax.random.normal(k7, (N2, C, L), dtype=jnp.float32)
    out2 = entity_avg_max_fc_bn_feats(subject2, object2, None, W, b)
    out2 = jax.block_until_ready(out2)
    ref2 = _reference_jax(subject2, object2, W, b)
    assert out2.shape == ref2.shape, (out2.shape, ref2.shape)
    assert jnp.allclose(out2, ref2, atol=1e-4, rtol=1e-4), float(jnp.max(jnp.abs(out2 - ref2)))

    print("KERNEL_OK")
</pallas_src>

<mosaic_0001>
module attributes {stable_mosaic.version = 11 : i64} {
  func.func @_entity_kernel(%arg0: i32, %arg1: memref<2x8x16xf32, #tpu.memory_space<vmem>>, %arg2: memref<2x8x16xf32, #tpu.memory_space<vmem>>, %arg3: memref<8x8xf32, #tpu.memory_space<vmem>>, %arg4: memref<1x8xf32, #tpu.memory_space<vmem>>, %arg5: memref<2x32xf32, #tpu.memory_space<vmem>>) attributes {dimension_semantics = [#tpu.dimension_semantics<parallel>], iteration_bounds = array<i64: 1>, scalar_prefetch = 0 : i64, scratch_operands = 0 : i64, tpu.core_type = #tpu.core_type<tc>, window_params = [{transform_indices = @transform_0, window_bounds = array<i64: 2, 8, 16>}, {transform_indices = @transform_1, window_bounds = array<i64: 2, 8, 16>}, {pipeline_mode = #tpu.pipeline_mode<synchronous>, transform_indices = @transform_2, window_bounds = array<i64: 8, 8>}, {pipeline_mode = #tpu.pipeline_mode<synchronous>, transform_indices = @transform_3, window_bounds = array<i64: 1, 8>}, {transform_indices = @transform_4, window_bounds = array<i64: 2, 32>}]} {
    %c0 = arith.constant 0 : index
    %c0_0 = arith.constant 0 : index
    %c0_1 = arith.constant 0 : index
    %0 = vector.load %arg1[%c0, %c0_0, %c0_1] : memref<2x8x16xf32, #tpu.memory_space<vmem>>, vector<2x8x16xf32>
    %c0_2 = arith.constant 0 : index
    %c0_3 = arith.constant 0 : index
    %c0_4 = arith.constant 0 : index
    %1 = vector.load %arg2[%c0_2, %c0_3, %c0_4] : memref<2x8x16xf32, #tpu.memory_space<vmem>>, vector<2x8x16xf32>
    %cst = arith.constant dense<0.000000e+00> : vector<2x8xf32>
    %2 = vector.multi_reduction <add>, %0, %cst [2] : vector<2x8x16xf32> to vector<2x8xf32>
    %cst_5 = arith.constant 6.250000e-02 : f32
    %3 = vector.broadcast %cst_5 : f32 to vector<2x8xf32>
    %4 = arith.mulf %2, %3 : vector<2x8xf32>
    %cst_6 = arith.constant dense<0xFF800000> : vector<2x8xf32>
    %5 = vector.multi_reduction <maximumf>, %0, %cst_6 [2] : vector<2x8x16xf32> to vector<2x8xf32>
    %cst_7 = arith.constant dense<0.000000e+00> : vector<2x8xf32>
    %6 = vector.multi_reduction <add>, %1, %cst_7 [2] : vector<2x8x16xf32> to vector<2x8xf32>
    %cst_8 = arith.constant 6.250000e-02 : f32
    %7 = vector.broadcast %cst_8 : f32 to vector<2x8xf32>
    %8 = arith.mulf %6, %7 : vector<2x8xf32>
    %cst_9 = arith.constant dense<0xFF800000> : vector<2x8xf32>
    %9 = vector.multi_reduction <maximumf>, %1, %cst_9 [2] : vector<2x8x16xf32> to vector<2x8xf32>
    %10 = tpu.concatenate %4, %5, %8, %9 in 0 : vector<2x8xf32>, vector<2x8xf32>, vector<2x8xf32>, vector<2x8xf32> -> vector<8x8xf32>
    %c0_10 = arith.constant 0 : index
    %c0_11 = arith.constant 0 : index
    %11 = vector.load %arg3[%c0_10, %c0_11] : memref<8x8xf32, #tpu.memory_space<vmem>>, vector<8x8xf32>
    %c0_12 = arith.constant 0 : index
    %c0_13 = arith.constant 0 : index
    %12 = vector.load %arg4[%c0_12, %c0_13] : memref<1x8xf32, #tpu.memory_space<vmem>>, vector<1x8xf32>
    %cst_14 = arith.constant dense<0.000000e+00> : vector<8x8xf32>
    %13 = tpu.matmul %10, %11, %cst_14 {dimension_numbers = #tpu.dot_dimension_numbers<[1], [1], [0], [0], [0, 0, 1, 0], [], []>} : vector<8x8xf32>, vector<8x8xf32>, vector<8x8xf32> -> vector<8x8xf32>
    %14 = vector.broadcast %12 : vector<1x8xf32> to vector<8x8xf32>
    %15 = arith.addf %13, %14 : vector<8x8xf32>
    %16 = vector.extract_strided_slice %15 {offsets = [0, 0], sizes = [2, 8], strides = [1, 1]} : vector<8x8xf32> to vector<2x8xf32>
    %c0_15 = arith.constant 0 : index
    %c0_16 = arith.constant 0 : index
    %17 = vector.load %arg5[%c0_15, %c0_16] : memref<2x32xf32, #tpu.memory_space<vmem>>, vector<2x8xf32>
    tpu.vector_store %arg5[%c0_15, %c0_16], %16 {strides = array<i32>} : memref<2x32xf32, #tpu.memory_space<vmem>>, vector<2x8xf32>,
    %18 = vector.extract_strided_slice %15 {offsets = [2, 0], sizes = [2, 8], strides = [1, 1]} : vector<8x8xf32> to vector<2x8xf32>
    %c0_17 = arith.constant 0 : index
    %c8 = arith.constant 8 : index
    %19 = vector.load %arg5[%c0_17, %c8] : memref<2x32xf32, #tpu.memory_space<vmem>>, vector<2x8xf32>
    tpu.vector_store %arg5[%c0_17, %c8], %18 {strides = array<i32>} : memref<2x32xf32, #tpu.memory_space<vmem>>, vector<2x8xf32>,
    %20 = vector.extract_strided_slice %15 {offsets = [4, 0], sizes = [2, 8], strides = [1, 1]} : vector<8x8xf32> to vector<2x8xf32>
    %c0_18 = arith.constant 0 : index
    %c16 = arith.constant 16 : index
    %21 = vector.load %arg5[%c0_18, %c16] : memref<2x32xf32, #tpu.memory_space<vmem>>, vector<2x8xf32>
    tpu.vector_store %arg5[%c0_18, %c16], %20 {strides = array<i32>} : memref<2x32xf32, #tpu.memory_space<vmem>>, vector<2x8xf32>,
    %22 = vector.extract_strided_slice %15 {offsets = [6, 0], sizes = [2, 8], strides = [1, 1]} : vector<8x8xf32> to vector<2x8xf32>
    %c0_19 = arith.constant 0 : index
    %c24 = arith.constant 24 : index
    %23 = vector.load %arg5[%c0_19, %c24] : memref<2x32xf32, #tpu.memory_space<vmem>>, vector<2x8xf32>
    tpu.vector_store %arg5[%c0_19, %c24], %22 {strides = array<i32>} : memref<2x32xf32, #tpu.memory_space<vmem>>, vector<2x8xf32>,
    return
  }
  func.func @transform_0(%arg0: i32) -> (i32, i32, i32) {
    %c0_i32 = arith.constant 0 : i32
    %c0_i32_0 = arith.constant 0 : i32
    %c0_i32_1 = arith.constant 0 : i32
    return %arg0, %c0_i32, %c0_i32_0 : i32, i32, i32
  }
  func.func @transform_1(%arg0: i32) -> (i32, i32, i32) {
    %c0_i32 = arith.constant 0 : i32
    %c0_i32_0 = arith.constant 0 : i32
    %c0_i32_1 = arith.constant 0 : i32
    return %arg0, %c0_i32, %c0_i32_0 : i32, i32, i32
  }
  func.func @transform_2(%arg0: i32) -> (i32, i32) {
    %c0_i32 = arith.constant 0 : i32
    %c0_i32_0 = arith.constant 0 : i32
    %c0_i32_1 = arith.constant 0 : i32
    return %c0_i32, %c0_i32_0 : i32, i32
  }
  func.func @transform_3(%arg0: i32) -> (i32, i32) {
    %c0_i32 = arith.constant 0 : i32
    %c0_i32_0 = arith.constant 0 : i32
    %c0_i32_1 = arith.constant 0 : i32
    return %c0_i32, %c0_i32_0 : i32, i32
  }
  func.func @transform_4(%arg0: i32) -> (i32, i32) {
    %c0_i32 = arith.constant 0 : i32
    %c0_i32_0 = arith.constant 0 : i32
    return %arg0, %c0_i32 : i32, i32
  }
}

</mosaic_0001>

<llo_original>
// kernel: _entity_pallas_call.1
$region0: #{_entity_pallas_call.1}
  #allocation0 [shape = 'u32[]', space=smem, size = 0x4, offset = 0x4, fixed_abs, tag = 'smem constant byte address 0x4 - core index']
  #allocation1 [shape = 'u32[72,128]{1,0:T(1,128)}', space=vmem, size = 0x9000, scoped, tag = 'internal scratch']
  %s0 = inlined_call_operand.hbm [shape: f32[2,8,16], index: 0, kind: input, shape index: {}]
  %s1 = inlined_call_operand.hbm [shape: f32[2,8,16], index: 1, kind: input, shape index: {}]
  %s2 = inlined_call_operand.hbm [shape: f32[8,8], index: 2, kind: input, shape index: {}]
  %s3 = inlined_call_operand.vmem [shape: f32[1,8], index: 3, kind: input, shape index: {}]
  %s4 = inlined_call_operand.hbm [shape: f32[2,32], index: 4, kind: output, shape index: {}]
  %s5 = sld [smem:[#allocation0]]
  $region38: #{_entity_pallas_call.1} parent=0
    _
  %s7 = ssub.s32 1, %s5
  %s8 = scalar_select 0, %s7, %s5
  $region1: #{_entity_pallas_call.1} parent=0
    #allocation2 [shape = 'u8[8192]{0}', space=vmem, size = 0x2000, scoped, tag = 'input window, operand 0, single buffered']
    #allocation3 [shape = 's32[1]{0}', space=sflag, size = 0x4, scoped, tag = 'scoped memory for _entity_pallas_call.1']
    #allocation4 [shape = 's32[1]{0}', space=sflag, size = 0x4, scoped, tag = 'scoped memory for _entity_pallas_call.1']
    #allocation5 [shape = 'u8[8192]{0}', space=vmem, size = 0x2000, scoped, tag = 'input window, operand 1, single buffered']
    #allocation6 [shape = 's32[1]{0}', space=sflag, size = 0x4, scoped, tag = 'scoped memory for _entity_pallas_call.1']
    #allocation7 [shape = 'u8[4096]{0}', space=vmem, size = 0x1000, scoped, tag = 'input window, operand 2, single buffered']
    #allocation8 [shape = 'u8[1024]{0}', space=vmem, size = 0x400, scoped, tag = 'output window, operand 0, single buffered']
    %9 = vsyncpa [#allocation3], 0
    %10 = vsyncpa [#allocation6], 0
    %11 = vsyncpa [#allocation4], 0
    // Predicated region
    $region2: #{_entity_pallas_call.1} parent=1 // pred_check
      _
    $region3: #{_entity_pallas_call.1} parent=1 // pred_check_branch
      %13 = sbr.rel (0) target = $region5
    $region4: #{_entity_pallas_call.1} parent=1 // pred_region
      %15 = vsyncadd [#allocation3], 0
      %s16 = sshll.u32 %s0, 4
      %s17 = int_to_ptr.hbm [resolvable:$true] %s16
      %s18 = sshll.u32 [#allocation2], 4
      %s19 = int_to_ptr.vmem [resolvable:$true] %s18
      %24 = dma.hbm_to_vmem [thread:$0]  %s17, 256, %s19, [#allocation3], 128, 128, 8
    $region5: #{_entity_pallas_call.1} parent=1 // pred_fallthru
      _
    // Predicated region
    $region6: #{_entity_pallas_call.1} parent=1 // pred_check
      _
    $region7: #{_entity_pallas_call.1} parent=1 // pred_check_branch
      %26 = sbr.rel (0) target = $region9
    $region8: #{_entity_pallas_call.1} parent=1 // pred_region
      %28 = vsyncadd [#allocation6], 0
      %s29 = sshll.u32 %s1, 4
      %s30 = int_to_ptr.hbm [resolvable:$true] %s29
      %s31 = sshll.u32 [#allocation5], 4
      %s32 = int_to_ptr.vmem [resolvable:$true] %s31
      %37 = dma.hbm_to_vmem [thread:$0]  %s30, 256, %s32, [#allocation6], 128, 128, 8
    $region9: #{_entity_pallas_call.1} parent=1 // pred_fallthru
      _
    // Predicated region
    $region10: #{_entity_pallas_call.1} parent=1 // pred_check
      _
    $region11: #{_entity_pallas_call.1} parent=1 // pred_check_branch
      %39 = sbr.rel (0) target = $region13
    $region12: #{_entity_pallas_call.1} parent=1 // pred_region
      %41 = vsyncadd [#allocation6], 0
      %s43 = sshll.u32 %s2, 4
      %s44 = int_to_ptr.hbm [resolvable:$true] %s43
      %s45 = sshll.u32 [#allocation7], 4
      %s46 = int_to_ptr.vmem [resolvable:$true] %s45
      %48 = dma.hbm_to_vmem [thread:$0]  %s44, 128, %s46, [#allocation6]
    $region13: #{_entity_pallas_call.1} parent=1 // pred_fallthru
      _
    // Predicated region
    $region14: #{_entity_pallas_call.1} parent=1 // pred_check
      _
    $region15: #{_entity_pallas_call.1} parent=1 // pred_check_branch
      %50 = sbr.rel (0) target = $region17
    $region16: #{_entity_pallas_call.1} parent=1 // pred_region
      _
    $region17: #{_entity_pallas_call.1} parent=1 // pred_fallthru
      _
    // Predicated region
    $region18: #{_entity_pallas_call.1} parent=1 // pred_check
      _
    $region19: #{_entity_pallas_call.1} parent=1 // pred_check_branch
      %52 = sbr.rel (0) target = $region21
    $region20: #{_entity_pallas_call.1} parent=1 // pred_region
      %54 = dma.done [#allocation3], 256
    $region21: #{_entity_pallas_call.1} parent=1 // pred_fallthru
      _
    // Predicated region
    $region22: #{_entity_pallas_call.1} parent=1 // pred_check
      _
    $region23: #{_entity_pallas_call.1} parent=1 // pred_check_branch
      %56 = sbr.rel (0) target = $region25
    $region24: #{_entity_pallas_call.1} parent=1 // pred_region
      %58 = dma.done [#allocation6], 256
    $region25: #{_entity_pallas_call.1} parent=1 // pred_fallthru
      _
    // Predicated region
    $region26: #{_entity_pallas_call.1} parent=1 // pred_check
      _
    $region27: #{_entity_pallas_call.1} parent=1 // pred_check_branch
      %60 = sbr.rel (0) target = $region29
    $region28: #{_entity_pallas_call.1} parent=1 // pred_region
      %62 = dma.done [#allocation6], 128
    $region29: #{_entity_pallas_call.1} parent=1 // pred_fallthru
      _
    %v63 = vld [vmem:[#allocation2] sm:$0xff]
    %v64 = vld [vmem:[#allocation2 + $0x8] sm:$0xff]
    %v65 = vld [vmem:[#allocation5] sm:$0xff]
    %v66 = vld [vmem:[#allocation5 + $0x8] sm:$0xff]
    %vm67 = vcmask 130048
    %v68 = vsel %vm67, %v63, 0.0
    %69 = vadd.xlane.f32.xlu0 %v68
    %v70 = vpop.xlane.xlu0 %69
    %v71 = vsel %vm67, %v64, 0.0
    %72 = vadd.xlane.f32.xlu0 %v71
    %v73 = vpop.xlane.xlu0 %72
    %v74 = vmul.f32 %v70, 0.0625
    %v75 = vmul.f32 %v73, 0.0625
    %v76 = vsel %vm67, %v63, -inf
    %77 = vmax.xlane.f32.xlu0 %v76
    %v78 = vpop.xlane.xlu0 %77
    %v79 = vsel %vm67, %v64, -inf
    %80 = vmax.xlane.f32.xlu0 %v79
    %v81 = vpop.xlane.xlu0 %80
    %v82 = vsel %vm67, %v65, 0.0
    %83 = vadd.xlane.f32.xlu0 %v82
    %v84 = vpop.xlane.xlu0 %83
    %v85 = vsel %vm67, %v66, 0.0
    %86 = vadd.xlane.f32.xlu0 %v85
    %v87 = vpop.xlane.xlu0 %86
    %v88 = vmul.f32 %v84, 0.0625
    %v89 = vmul.f32 %v87, 0.0625
    %v90 = vsel %vm67, %v65, -inf
    %91 = vmax.xlane.f32.xlu0 %v90
    %v92 = vpop.xlane.xlu0 %91
    %v93 = vsel %vm67, %v66, -inf
    %94 = vmax.xlane.f32.xlu0 %v93
    %v95 = vpop.xlane.xlu0 %94
    %v98 = vlaneseq
    %v99 = vand.u32 %v98, 127
    %v100 = vperm.slane %v74, %v99
    %v101 = vperm.slane %v75, %v99
    %vm102 = vcmask 1041409
    %v103 = vsel %vm102, %v101, %v100
    %v107 = vperm.slane %v78, %v99
    %v108 = vperm.slane %v81, %v99
    %vm109 = vcmask 1043459
    %v110 = vsel %vm109, %v108, %v107
    %v114 = vperm.slane %v88, %v99
    %v115 = vperm.slane %v89, %v99
    %vm116 = vcmask 1045509
    %v117 = vsel %vm116, %v115, %v114
    %v121 = vperm.slane %v92, %v99
    %v122 = vperm.slane %v95, %v99
    %vm123 = vcmask 1047559
    %v124 = vsel %vm123, %v122, %v121
    %vm126 = vcmask 1041408
    %v127 = vsel %vm126, %v103, %v110
    %vm128 = vcmask 1043456
    %v129 = vsel %vm128, %v127, %v117
    %vm130 = vcmask 1045504
    %v131 = vsel %vm130, %v129, %v124
    %v132 = vld [vmem:[#allocation7] sm:$0xff]
    %v133 = vld [vmem:[%s3] sm:$0x1]
    %v135 = vperm.slane %v133, 0
    %vm137 = vcmask 64512
    %v139 = vsel %vm137, %v131, 0
    %v142 = vsel %vm137, %v132, 0
    %144 = vmatpush.xpose.msra.mxu0 0.0
    %145 = vmatpush.xpose.msra.mxu0 0.0
    %146 = vmatpush.xpose.msra.mxu0 0.0
    %147 = vmatpush.xpose.msra.mxu0 0.0
    %148 = vmatpush.xpose.msra.mxu0 0.0
    %149 = vmatpush.xpose.msra.mxu0 0.0
    %150 = vmatpush.xpose.msra.mxu0 0.0
    %151 = vmatpush.xpose.msra.mxu0 0.0
    %152 = vmatpush.xpose.msra.mxu0 0.0
    %153 = vmatpush.xpose.msra.mxu0 0.0
    %154 = vmatpush.xpose.msra.mxu0 0.0
    %155 = vmatpush.xpose.msra.mxu0 0.0
    %156 = vmatpush.xpose.msra.mxu0 0.0
    %157 = vmatpush.xpose.msra.mxu0 0.0
    %158 = vmatpush.xpose.msra.mxu0 0.0
    %159 = vmatpush.xpose.msra.mxu0 %v142
    %160 = vmatmul.f32.gmra.mxu0 %v139
    %v161 = vpop.f32.mrf.mxu0
    %v162 = vadd.f32 %v135, %v161
    %163 = vdwg.mxu0
    %vm164 = vcmask 58368
    %165 = vst.msk [vmem:[#allocation8] sm:$0x3] %vm164, %v162
    %167 = vrot.lane.b32.xlu0 %v162, 8
    %v168 = vpop.permute.xlu0 %167
    %vm170 = vcmask 126018
    %171 = vst.msk [vmem:[#allocation8 - $0x2] sm:$0xc] %vm170, %v168
    %172 = vrot.lane.b32.xlu0 %v162, 16
    %v173 = vpop.permute.xlu0 %172
    %vm175 = vcmask 193668
    %176 = vst.msk [vmem:[#allocation8 - $0x4] sm:$0x30] %vm175, %v173
    %177 = vrot.lane.b32.xlu0 %v162, 24
    %v178 = vpop.permute.xlu0 %177
    %vm180 = vcmask 261318
    %181 = vst.msk [vmem:[#allocation8 - $0x6] sm:$0xc0] %vm180, %v178
    // Predicated region
    $region30: #{_entity_pallas_call.1} parent=1 // pred_check
      _
    $region31: #{_entity_pallas_call.1} parent=1 // pred_check_branch
      %183 = sbr.rel (0) target = $region33
    $region32: #{_entity_pallas_call.1} parent=1 // pred_region
      %185 = vsyncadd [#allocation4], 0
      %s187 = sshll.u32 [#allocation8], 4
      %s188 = int_to_ptr.vmem [resolvable:$true] %s187
      %s189 = sshll.u32 %s4, 4
      %s190 = int_to_ptr.hbm [resolvable:$true] %s189
      %192 = dma.vmem_to_hbm [thread:$0]  %s188, 32, %s190, [#allocation4]
    $region33: #{_entity_pallas_call.1} parent=1 // pred_fallthru
      _
    // Predicated region
    $region34: #{_entity_pallas_call.1} parent=1 // pred_check
      _
    $region35: #{_entity_pallas_call.1} parent=1 // pred_check_branch
      %194 = sbr.rel (0) target = $region37
    $region36: #{_entity_pallas_call.1} parent=1 // pred_region
      %196 = dma.done [#allocation4], 32
    $region37: #{_entity_pallas_call.1} parent=1 // pred_fallthru
      _
    %197 = vsyncpa [#allocation3], 1
    %198 = vsyncpa [#allocation6], 1
    %199 = vsyncpa [#allocation4], 1

</llo_original>
